<compile_context>
chip_gen: v7x
topology: tpu7x:2x2x1
jax: 0.10.0
libtpu: 0.0.40
codegen_flags: <defaults>
</compile_context>

<pallas_src>
import functools

import jax
import jax.numpy as jnp
from jax.experimental import pallas as pl
from jax.experimental.pallas import tpu as pltpu

LN_EPS = 1e-5


def _cdiv(a, b):
    return -(-a // b)


def _round_up(x, m):
    return ((x + m - 1) // m) * m


def _vmem_capacity_bytes():
    """Per-TensorCore VMEM capacity; conservative 64 MiB (v7x) fallback."""
    try:
        cap = int(pltpu.get_tpu_info().vmem_capacity_bytes)
        if cap > 0:
            return cap
    except Exception:
        pass
    return 64 << 20


def _layer_norm_f32(y, gamma, beta):
    # PyTorch LayerNorm: mean / biased variance over last dim, eps inside rsqrt.
    mean = jnp.mean(y, axis=-1, keepdims=True)
    c = y - mean
    var = jnp.mean(c * c, axis=-1, keepdims=True)
    inv = jax.lax.rsqrt(var + LN_EPS)
    return c * inv * gamma + beta


def _split_affine(aff_ref):
    # Packed rows: [b_vision, b_text, ln_gamma, ln_beta], each [1, L].
    aff = aff_ref[...].astype(jnp.float32)
    return aff[0:1, :], aff[1:2, :], aff[2:3, :], aff[3:4, :]


# --------------------------------------------------------------------------
# Kernels
# --------------------------------------------------------------------------
def _proj_ln_resident_kernel(vx_ref, tx_ref, wv_ref, wt_ref, aff_ref,
                             ov_ref, ot_ref):
    b_v, b_t, gamma, beta = _split_affine(aff_ref)
    # Vision branch: [tb, Dv] @ [Dv, L], f32 MXU accumulation.
    yv = jnp.dot(vx_ref[...], wv_ref[...],
                 preferred_element_type=jnp.float32) + b_v
    ov_ref[...] = _layer_norm_f32(yv, gamma, beta).astype(ov_ref.dtype)
    # Text branch: [tb, Dt] @ [Dt, L].
    yt = jnp.dot(tx_ref[...], wt_ref[...],
                 preferred_element_type=jnp.float32) + b_t
    ot_ref[...] = _layer_norm_f32(yt, gamma, beta).astype(ot_ref.dtype)


def _proj_ln_kstream_kernel(vx_ref, tx_ref, wv_ref, wt_ref, aff_ref,
                            ov_ref, ot_ref, accv_ref, acct_ref, *, nkv, nkt):
    k = pl.program_id(1)

    @pl.when(k == 0)
    def _():
        accv_ref[...] = jnp.zeros_like(accv_ref)
        acct_ref[...] = jnp.zeros_like(acct_ref)

    # The two branches may have a different number of K blocks; skip blocks
    # past each branch's extent (the index_map clamps, so the skipped DMA just
    # re-fetches the last valid block and the compute is gated off).
    @pl.when(k < nkv)
    def _():
        accv_ref[...] += jnp.dot(vx_ref[...], wv_ref[...],
                                 preferred_element_type=jnp.float32)

    @pl.when(k < nkt)
    def _():
        acct_ref[...] += jnp.dot(tx_ref[...], wt_ref[...],
                                 preferred_element_type=jnp.float32)

    @pl.when(k == pl.num_programs(1) - 1)
    def _():
        b_v, b_t, gamma, beta = _split_affine(aff_ref)
        ov_ref[...] = _layer_norm_f32(accv_ref[...] + b_v, gamma,
                                      beta).astype(ov_ref.dtype)
        ot_ref[...] = _layer_norm_f32(acct_ref[...] + b_t, gamma,
                                      beta).astype(ot_ref.dtype)


# --------------------------------------------------------------------------
# Tiling helpers
# --------------------------------------------------------------------------
def _pick_tk(d, max_tk):
    """Largest multiple-of-128 divisor of d that is <= max_tk (0 if none)."""
    t = (min(max_tk, d) // 128) * 128
    while t >= 128:
        if d % t == 0:
            return t
        t -= 128
    return 0


def _prep_kdim(x, w, d, max_tk):
    """Pick a K tile for one branch; zero-pad K only if unavoidable."""
    tk = _pick_tk(d, max_tk)
    if tk > 0:
        return tk, x, w
    # d has no 128-multiple divisor <= max_tk: zero-pad the contraction dim
    # (exact: padded products are 0).  Costs one HBM copy of this branch's
    # activations/weights, so it only happens for awkward (non-128) dims.
    tk = min(_round_up(max_tk, 128), _round_up(d, 128))
    d_pad = _round_up(d, tk)
    x = jnp.pad(x, ((0, 0), (0, d_pad - d)))
    w = jnp.pad(w, ((0, d_pad - d), (0, 0)))
    return tk, x, w


def _pick_tb(step_bytes, batch, budget, max_tb, row_align):
    """Largest batch tile that fits the VMEM budget, aligned to row_align."""
    tb = max(row_align, _round_up(min(max_tb, batch), row_align))
    while tb > row_align and step_bytes(tb) > budget:
        tb = max(row_align, (tb // 2 // row_align) * row_align)
    # Prefer >= 2 grid steps for large batches so the "parallel" batch axis
    # can shard across v7x's two TensorCores; then balance the tiles.
    nsteps = _cdiv(batch, tb)
    if nsteps == 1 and batch >= 128:
        nsteps = 2
    tb = max(row_align, min(tb, _round_up(_cdiv(batch, nsteps), row_align)))
    return tb


# --------------------------------------------------------------------------
# Wrapper
# --------------------------------------------------------------------------
def vision_text_projector(vision_features, text_features, params, *,
                          compute_dtype=jnp.bfloat16, out_dtype=None,
                          max_block_b=512, max_block_k=512,
                          force_k_stream=False):
    """Fused vision/text projection + shared LayerNorm.

    vision_features: [B, vision_dim], text_features: [B, text_dim]
    Returns (projected_vision, projected_text), each [B, latent_dim].

    compute_dtype: matmul input dtype (default bf16 -> MXU-native; matmul
      accumulation and LayerNorm statistics are always f32).  Pass
      jnp.float32 where numerical parity with the PyTorch f32 forward is
      required.  out_dtype defaults to compute_dtype.
    """
    B, Dv = vision_features.shape
    Bt, Dt = text_features.shape
    assert Bt == B, "batch mismatch"
    L = params["w_vision"].shape[1]

    if out_dtype is None:
        out_dtype = compute_dtype

    vx = vision_features.astype(compute_dtype)
    tx = text_features.astype(compute_dtype)
    wv = params["w_vision"].astype(compute_dtype)      # [Dv, L]
    wt = params["w_text"].astype(compute_dtype)        # [Dt, L]
    # Pack the four [1, L] vectors into one [4, L] f32 slab (one tiny DMA).
    aff = jnp.concatenate(
        [params["b_vision"].reshape(1, L), params["b_text"].reshape(1, L),
         params["ln_gamma"].reshape(1, L), params["ln_beta"].reshape(1, L)],
        axis=0).astype(jnp.float32)

    act_b = jnp.dtype(compute_dtype).itemsize
    out_b = jnp.dtype(out_dtype).itemsize
    # Sublane alignment of the batch tile (8 for 32-bit, 16 for 16-bit types).
    row_align = 8 if act_b >= 4 else (16 if act_b == 2 else 32)

    vmem_cap = _vmem_capacity_bytes()
    budget = int(vmem_cap * 0.85)
    weight_bytes = (Dv + Dt) * L * act_b
    affine_bytes = 4 * L * 4

    # Stream weights over the contraction dim when they can't be VMEM-resident
    # (mandatory for large latent/feature dims on v7x's 64 MiB VMEM).
    use_stream = force_k_stream or (weight_bytes > budget // 3)

    if not use_stream:
        def step_bytes(tb):
            return (2 * tb * (Dv + Dt) * act_b      # double-buffered act tiles
                    + 2 * 2 * tb * L * out_b        # double-buffered out tiles
                    + weight_bytes + affine_bytes   # Buffered(1) residents
                    + 4 * tb * L * 4)               # f32 temporaries headroom

        tb = _pick_tb(step_bytes, B, budget, max_block_b, row_align)
        grid = (_cdiv(B, tb),)
        in_specs = [
            pl.BlockSpec((tb, Dv), lambda i: (i, 0)),
            pl.BlockSpec((tb, Dt), lambda i: (i, 0)),
            # Constant-index blocks: single-buffer so the resident weights are
            # not silently double-buffered by the pipeliner.
            pl.BlockSpec((Dv, L), lambda i: (0, 0), pipeline_mode=pl.Buffered(1)),
            pl.BlockSpec((Dt, L), lambda i: (0, 0), pipeline_mode=pl.Buffered(1)),
            pl.BlockSpec((4, L), lambda i: (0, 0), pipeline_mode=pl.Buffered(1)),
        ]
        out_specs = [pl.BlockSpec((tb, L), lambda i: (i, 0)),
                     pl.BlockSpec((tb, L), lambda i: (i, 0))]
        scratch_shapes = []
        kernel = _proj_ln_resident_kernel
        dim_sem = ("parallel",)
    else:
        tkv, vx, wv = _prep_kdim(vx, wv, Dv, max_block_k)
        tkt, tx, wt = _prep_kdim(tx, wt, Dt, max_block_k)
        nkv = wv.shape[0] // tkv
        nkt = wt.shape[0] // tkt
        nk = max(nkv, nkt)

        def step_bytes(tb):
            return (2 * tb * (tkv + tkt) * act_b    # double-buffered act K tiles
                    + 2 * (tkv + tkt) * L * act_b   # double-buffered weight K tiles
                    + 2 * 2 * tb * L * out_b        # double-buffered out tiles
                    + affine_bytes
                    + 2 * tb * L * 4                # f32 accumulators (scratch)
                    + 3 * tb * L * 4)               # f32 temporaries headroom

        tb = _pick_tb(step_bytes, B, budget, max_block_b, row_align)
        grid = (_cdiv(B, tb), nk)
        in_specs = [
            pl.BlockSpec((tb, tkv), lambda i, k, n=nkv: (i, jnp.minimum(k, n - 1))),
            pl.BlockSpec((tb, tkt), lambda i, k, n=nkt: (i, jnp.minimum(k, n - 1))),
            pl.BlockSpec((tkv, L), lambda i, k, n=nkv: (jnp.minimum(k, n - 1), 0)),
            pl.BlockSpec((tkt, L), lambda i, k, n=nkt: (jnp.minimum(k, n - 1), 0)),
            pl.BlockSpec((4, L), lambda i, k: (0, 0), pipeline_mode=pl.Buffered(1)),
        ]
        out_specs = [pl.BlockSpec((tb, L), lambda i, k: (i, 0)),
                     pl.BlockSpec((tb, L), lambda i, k: (i, 0))]
        scratch_shapes = [pltpu.VMEM((tb, L), jnp.float32),
                          pltpu.VMEM((tb, L), jnp.float32)]
        kernel = functools.partial(_proj_ln_kstream_kernel, nkv=nkv, nkt=nkt)
        dim_sem = ("parallel", "arbitrary")

    # Generation-aware scoped-VMEM limit: at least the computed footprint
    # (+slack), never above ~95% of physical per-core VMEM (64 MiB on v7x,
    # 128 MiB on v5e/v6e; v5e's default scoped limit of 16 MiB is overridden).
    needed = step_bytes(tb)
    vmem_limit = int(min(max(needed + (4 << 20), 32 << 20),
                         int(vmem_cap * 0.95)))

    grid_spec = pltpu.PrefetchScalarGridSpec(
        num_scalar_prefetch=0,
        grid=grid,
        in_specs=in_specs,
        out_specs=out_specs,
        scratch_shapes=scratch_shapes)

    ov, ot = pl.pallas_call(
        kernel,
        out_shape=(jax.ShapeDtypeStruct((B, L), out_dtype),
                   jax.ShapeDtypeStruct((B, L), out_dtype)),
        grid_spec=grid_spec,
        compiler_params=pltpu.CompilerParams(
            dimension_semantics=dim_sem,
            vmem_limit_bytes=vmem_limit),
    )(vx, tx, wv, wt, aff)
    return ov, ot


# --------------------------------------------------------------------------
# Params + reference
# --------------------------------------------------------------------------
def init_params(key, vision_dim, text_dim, latent_dim):
    kv, kvb, kt, ktb = jax.random.split(key, 4)
    bound_v = 1.0 / jnp.sqrt(vision_dim)
    bound_t = 1.0 / jnp.sqrt(text_dim)
    return {
        "w_vision": jax.random.uniform(kv, (vision_dim, latent_dim),
                                       jnp.float32, -bound_v, bound_v),
        "b_vision": jax.random.uniform(kvb, (1, latent_dim),
                                       jnp.float32, -bound_v, bound_v),
        "w_text": jax.random.uniform(kt, (text_dim, latent_dim),
                                     jnp.float32, -bound_t, bound_t),
        "b_text": jax.random.uniform(ktb, (1, latent_dim),
                                     jnp.float32, -bound_t, bound_t),
        "ln_gamma": jnp.ones((1, latent_dim), jnp.float32),
        "ln_beta": jnp.zeros((1, latent_dim), jnp.float32),
    }


def _reference(vision_features, text_features, params):
    hp = jax.lax.Precision.HIGHEST

    def ln(y):
        mean = jnp.mean(y, axis=-1, keepdims=True)
        var = jnp.mean((y - mean) ** 2, axis=-1, keepdims=True)
        return ((y - mean) / jnp.sqrt(var + LN_EPS)) * params["ln_gamma"] \
            + params["ln_beta"]

    pv = ln(jnp.dot(vision_features, params["w_vision"], precision=hp)
            + params["b_vision"])
    pt = ln(jnp.dot(text_features, params["w_text"], precision=hp)
            + params["b_text"])
    return pv, pt


if __name__ == "__main__":
    key = jax.random.PRNGKey(0)
    k_params, k_v, k_t, k_params2, k_v2, k_t2 = jax.random.split(key, 6)

    # ---- Small-shape resident-weight path --------------------------------
    batch, vision_dim, text_dim, latent_dim = 2, 16, 24, 32
    params = init_params(k_params, vision_dim, text_dim, latent_dim)
    vision_features = jax.random.normal(k_v, (batch, vision_dim), jnp.float32)
    text_features = jax.random.normal(k_t, (batch, text_dim), jnp.float32)
    ref_pv, ref_pt = _reference(vision_features, text_features, params)

    # f32 compute path (parity with the PyTorch f32 forward).
    pv, pt = vision_text_projector(vision_features, text_features, params,
                                   compute_dtype=jnp.float32)
    jax.block_until_ready((pv, pt))
    assert pv.shape == (batch, latent_dim) and pt.shape == (batch, latent_dim)
    assert jnp.allclose(pv, ref_pv, atol=2e-2, rtol=2e-2)
    assert jnp.allclose(pt, ref_pt, atol=2e-2, rtol=2e-2)

    # Default path: bf16 compute/output (MXU-native), f32 accumulation + LN.
    pv16, pt16 = vision_text_projector(vision_features, text_features, params)
    jax.block_until_ready((pv16, pt16))
    assert pv16.dtype == jnp.bfloat16 and pt16.dtype == jnp.bfloat16
    assert jnp.allclose(pv16.astype(jnp.float32), ref_pv, atol=0.2, rtol=0.2)
    assert jnp.allclose(pt16.astype(jnp.float32), ref_pt, atol=0.2, rtol=0.2)

    # ---- K-streamed weight path (forced at small, 128-aligned dims) ------
    b2, dv2, dt2, l2 = 20, 256, 384, 256
    params2 = init_params(k_params2, dv2, dt2, l2)
    v2 = jax.random.normal(k_v2, (b2, dv2), jnp.float32)
    t2 = jax.random.normal(k_t2, (b2, dt2), jnp.float32)
    ref2_pv, ref2_pt = _reference(v2, t2, params2)
    spv, spt = vision_text_projector(v2, t2, params2,
                                     compute_dtype=jnp.float32,
                                     force_k_stream=True, max_block_k=128)
    jax.block_until_ready((spv, spt))
    assert spv.shape == (b2, l2) and spt.shape == (b2, l2)
    assert jnp.allclose(spv, ref2_pv, atol=2e-2, rtol=2e-2)
    assert jnp.allclose(spt, ref2_pt, atol=2e-2, rtol=2e-2)

    print("KERNEL_OK")
</pallas_src>

<mosaic_0001>
module attributes {stable_mosaic.version = 11 : i64} {
  func.func @_proj_ln_resident_kernel(%arg0: i32, %arg1: memref<8x16xf32, #tpu.memory_space<vmem>>, %arg2: memref<8x24xf32, #tpu.memory_space<vmem>>, %arg3: memref<16x32xf32, #tpu.memory_space<vmem>>, %arg4: memref<24x32xf32, #tpu.memory_space<vmem>>, %arg5: memref<4x32xf32, #tpu.memory_space<vmem>>, %arg6: memref<8x32xf32, #tpu.memory_space<vmem>>, %arg7: memref<8x32xf32, #tpu.memory_space<vmem>>) attributes {dimension_semantics = [#tpu.dimension_semantics<parallel>], iteration_bounds = array<i64: 1>, scalar_prefetch = 0 : i64, scratch_operands = 0 : i64, tpu.core_type = #tpu.core_type<tc>, window_params = [{transform_indices = @transform_0, window_bounds = array<i64: 8, 16>}, {transform_indices = @transform_1, window_bounds = array<i64: 8, 24>}, {pipeline_mode = #tpu.pipeline_mode<synchronous>, transform_indices = @transform_2, window_bounds = array<i64: 16, 32>}, {pipeline_mode = #tpu.pipeline_mode<synchronous>, transform_indices = @transform_3, window_bounds = array<i64: 24, 32>}, {pipeline_mode = #tpu.pipeline_mode<synchronous>, transform_indices = @transform_4, window_bounds = array<i64: 4, 32>}, {transform_indices = @transform_5, window_bounds = array<i64: 8, 32>}, {transform_indices = @transform_6, window_bounds = array<i64: 8, 32>}]} {
    %c0 = arith.constant 0 : index
    %c0_0 = arith.constant 0 : index
    %0 = vector.load %arg5[%c0, %c0_0] : memref<4x32xf32, #tpu.memory_space<vmem>>, vector<4x32xf32>
    %1 = vector.extract_strided_slice %0 {offsets = [0, 0], sizes = [1, 32], strides = [1, 1]} : vector<4x32xf32> to vector<1x32xf32>
    %2 = vector.extract_strided_slice %0 {offsets = [1, 0], sizes = [1, 32], strides = [1, 1]} : vector<4x32xf32> to vector<1x32xf32>
    %3 = vector.extract_strided_slice %0 {offsets = [2, 0], sizes = [1, 32], strides = [1, 1]} : vector<4x32xf32> to vector<1x32xf32>
    %4 = vector.extract_strided_slice %0 {offsets = [3, 0], sizes = [1, 32], strides = [1, 1]} : vector<4x32xf32> to vector<1x32xf32>
    %c0_1 = arith.constant 0 : index
    %c0_2 = arith.constant 0 : index
    %5 = vector.load %arg1[%c0_1, %c0_2] : memref<8x16xf32, #tpu.memory_space<vmem>>, vector<8x16xf32>
    %c0_3 = arith.constant 0 : index
    %c0_4 = arith.constant 0 : index
    %6 = vector.load %arg3[%c0_3, %c0_4] : memref<16x32xf32, #tpu.memory_space<vmem>>, vector<16x32xf32>
    %cst = arith.constant dense<0.000000e+00> : vector<8x32xf32>
    %7 = tpu.matmul %5, %6, %cst {dimension_numbers = #tpu.dot_dimension_numbers<[1], [0], [0], [1], [0, 0, 1, 1], [], []>} : vector<8x16xf32>, vector<16x32xf32>, vector<8x32xf32> -> vector<8x32xf32>
    %8 = vector.broadcast %1 : vector<1x32xf32> to vector<8x32xf32>
    %9 = arith.addf %7, %8 : vector<8x32xf32>
    %cst_5 = arith.constant dense<0.000000e+00> : vector<8xf32>
    %10 = vector.multi_reduction <add>, %9, %cst_5 [1] : vector<8x32xf32> to vector<8xf32>
    %11 = vector.shape_cast %10 : vector<8xf32> to vector<8x1xf32>
    %cst_6 = arith.constant 3.200000e+01 : f32
    %12 = vector.broadcast %cst_6 : f32 to vector<8x1xf32>
    %13 = arith.divf %11, %12 : vector<8x1xf32>
    %14 = vector.broadcast %13 : vector<8x1xf32> to vector<8x32xf32>
    %15 = arith.subf %9, %14 : vector<8x32xf32>
    %16 = arith.mulf %15, %15 : vector<8x32xf32>
    %cst_7 = arith.constant dense<0.000000e+00> : vector<8xf32>
    %17 = vector.multi_reduction <add>, %16, %cst_7 [1] : vector<8x32xf32> to vector<8xf32>
    %18 = vector.shape_cast %17 : vector<8xf32> to vector<8x1xf32>
    %cst_8 = arith.constant 3.200000e+01 : f32
    %19 = vector.broadcast %cst_8 : f32 to vector<8x1xf32>
    %20 = arith.divf %18, %19 : vector<8x1xf32>
    %cst_9 = arith.constant 9.99999974E-6 : f32
    %21 = vector.broadcast %cst_9 : f32 to vector<8x1xf32>
    %22 = arith.addf %20, %21 : vector<8x1xf32>
    %23 = math.rsqrt %22 : vector<8x1xf32>
    %24 = vector.broadcast %23 : vector<8x1xf32> to vector<8x32xf32>
    %25 = arith.mulf %15, %24 : vector<8x32xf32>
    %26 = vector.broadcast %3 : vector<1x32xf32> to vector<8x32xf32>
    %27 = arith.mulf %25, %26 : vector<8x32xf32>
    %28 = vector.broadcast %4 : vector<1x32xf32> to vector<8x32xf32>
    %29 = arith.addf %27, %28 : vector<8x32xf32>
    %c0_10 = arith.constant 0 : index
    %c0_11 = arith.constant 0 : index
    %30 = vector.load %arg6[%c0_10, %c0_11] : memref<8x32xf32, #tpu.memory_space<vmem>>, vector<8x32xf32>
    tpu.vector_store %arg6[%c0_10, %c0_11], %29 {strides = array<i32>} : memref<8x32xf32, #tpu.memory_space<vmem>>, vector<8x32xf32>,
    %c0_12 = arith.constant 0 : index
    %c0_13 = arith.constant 0 : index
    %31 = vector.load %arg2[%c0_12, %c0_13] : memref<8x24xf32, #tpu.memory_space<vmem>>, vector<8x24xf32>
    %c0_14 = arith.constant 0 : index
    %c0_15 = arith.constant 0 : index
    %32 = vector.load %arg4[%c0_14, %c0_15] : memref<24x32xf32, #tpu.memory_space<vmem>>, vector<24x32xf32>
    %cst_16 = arith.constant dense<0.000000e+00> : vector<8x32xf32>
    %33 = tpu.matmul %31, %32, %cst_16 {dimension_numbers = #tpu.dot_dimension_numbers<[1], [0], [0], [1], [0, 0, 1, 1], [], []>} : vector<8x24xf32>, vector<24x32xf32>, vector<8x32xf32> -> vector<8x32xf32>
    %34 = vector.broadcast %2 : vector<1x32xf32> to vector<8x32xf32>
    %35 = arith.addf %33, %34 : vector<8x32xf32>
    %cst_17 = arith.constant dense<0.000000e+00> : vector<8xf32>
    %36 = vector.multi_reduction <add>, %35, %cst_17 [1] : vector<8x32xf32> to vector<8xf32>
    %37 = vector.shape_cast %36 : vector<8xf32> to vector<8x1xf32>
    %cst_18 = arith.constant 3.200000e+01 : f32
    %38 = vector.broadcast %cst_18 : f32 to vector<8x1xf32>
    %39 = arith.divf %37, %38 : vector<8x1xf32>
    %40 = vector.broadcast %39 : vector<8x1xf32> to vector<8x32xf32>
    %41 = arith.subf %35, %40 : vector<8x32xf32>
    %42 = arith.mulf %41, %41 : vector<8x32xf32>
    %cst_19 = arith.constant dense<0.000000e+00> : vector<8xf32>
    %43 = vector.multi_reduction <add>, %42, %cst_19 [1] : vector<8x32xf32> to vector<8xf32>
    %44 = vector.shape_cast %43 : vector<8xf32> to vector<8x1xf32>
    %cst_20 = arith.constant 3.200000e+01 : f32
    %45 = vector.broadcast %cst_20 : f32 to vector<8x1xf32>
    %46 = arith.divf %44, %45 : vector<8x1xf32>
    %cst_21 = arith.constant 9.99999974E-6 : f32
    %47 = vector.broadcast %cst_21 : f32 to vector<8x1xf32>
    %48 = arith.addf %46, %47 : vector<8x1xf32>
    %49 = math.rsqrt %48 : vector<8x1xf32>
    %50 = vector.broadcast %49 : vector<8x1xf32> to vector<8x32xf32>
    %51 = arith.mulf %41, %50 : vector<8x32xf32>
    %52 = vector.broadcast %3 : vector<1x32xf32> to vector<8x32xf32>
    %53 = arith.mulf %51, %52 : vector<8x32xf32>
    %54 = vector.broadcast %4 : vector<1x32xf32> to vector<8x32xf32>
    %55 = arith.addf %53, %54 : vector<8x32xf32>
    %c0_22 = arith.constant 0 : index
    %c0_23 = arith.constant 0 : index
    %56 = vector.load %arg7[%c0_22, %c0_23] : memref<8x32xf32, #tpu.memory_space<vmem>>, vector<8x32xf32>
    tpu.vector_store %arg7[%c0_22, %c0_23], %55 {strides = array<i32>} : memref<8x32xf32, #tpu.memory_space<vmem>>, vector<8x32xf32>,
    return
  }
  func.func @transform_0(%arg0: i32) -> (i32, i32) {
    %c0_i32 = arith.constant 0 : i32
    %c0_i32_0 = arith.constant 0 : i32
    return %arg0, %c0_i32 : i32, i32
  }
  func.func @transform_1(%arg0: i32) -> (i32, i32) {
    %c0_i32 = arith.constant 0 : i32
    %c0_i32_0 = arith.constant 0 : i32
    return %arg0, %c0_i32 : i32, i32
  }
  func.func @transform_2(%arg0: i32) -> (i32, i32) {
    %c0_i32 = arith.constant 0 : i32
    %c0_i32_0 = arith.constant 0 : i32
    %c0_i32_1 = arith.constant 0 : i32
    return %c0_i32, %c0_i32_0 : i32, i32
  }
  func.func @transform_3(%arg0: i32) -> (i32, i32) {
    %c0_i32 = arith.constant 0 : i32
    %c0_i32_0 = arith.constant 0 : i32
    %c0_i32_1 = arith.constant 0 : i32
    return %c0_i32, %c0_i32_0 : i32, i32
  }
  func.func @transform_4(%arg0: i32) -> (i32, i32) {
    %c0_i32 = arith.constant 0 : i32
    %c0_i32_0 = arith.constant 0 : i32
    %c0_i32_1 = arith.constant 0 : i32
    return %c0_i32, %c0_i32_0 : i32, i32
  }
  func.func @transform_5(%arg0: i32) -> (i32, i32) {
    %c0_i32 = arith.constant 0 : i32
    %c0_i32_0 = arith.constant 0 : i32
    return %arg0, %c0_i32 : i32, i32
  }
  func.func @transform_6(%arg0: i32) -> (i32, i32) {
    %c0_i32 = arith.constant 0 : i32
    %c0_i32_0 = arith.constant 0 : i32
    return %arg0, %c0_i32 : i32, i32
  }
}

</mosaic_0001>

<llo_original>
// kernel: tpu_custom_call.1
$region0: #{tpu_custom_call.1}
  #allocation0 [shape = 'u32[]', space=smem, size = 0x4, offset = 0x4, fixed_abs, tag = 'smem constant byte address 0x4 - core index']
  #allocation1 [shape = 'u32[144,128]{1,0:T(1,128)}', space=vmem, size = 0x12000, scoped, tag = 'internal scratch']
  %s0 = inlined_call_operand.hbm [shape: f32[2,16], index: 0, kind: input, shape index: {}]
  %s1 = inlined_call_operand.vmem [shape: f32[2,24], index: 1, kind: input, shape index: {}]
  %s2 = inlined_call_operand.hbm [shape: f32[16,32], index: 2, kind: input, shape index: {}]
  %s3 = inlined_call_operand.hbm [shape: f32[24,32], index: 3, kind: input, shape index: {}]
  %s4 = inlined_call_operand.vmem [shape: f32[4,32], index: 4, kind: input, shape index: {}]
  %s5 = inlined_call_operand.hbm [shape: f32[2,32], index: 5, kind: output, shape index: {0}]
  %s6 = inlined_call_operand.hbm [shape: f32[2,32], index: 6, kind: output, shape index: {1}]
  %7 = xla_tuple %s5, %s6
  %s8 = sld [smem:[#allocation0]]
  $region50: #{tpu_custom_call.1} parent=0
    _
  %s10 = ssub.s32 1, %s8
  %s11 = scalar_select 0, %s10, %s8
  $region1: #{tpu_custom_call.1} parent=0
    #allocation2 [shape = 'u8[4096]{0}', space=vmem, size = 0x1000, scoped, tag = 'input window, operand 0, single buffered']
    #allocation3 [shape = 's32[1]{0}', space=sflag, size = 0x4, scoped, tag = 'scoped memory for tpu_custom_call.1']
    #allocation4 [shape = 's32[1]{0}', space=sflag, size = 0x4, scoped, tag = 'scoped memory for tpu_custom_call.1']
    #allocation5 [shape = 'u8[8192]{0}', space=vmem, size = 0x2000, scoped, tag = 'input window, operand 2, single buffered']
    #allocation6 [shape = 's32[1]{0}', space=sflag, size = 0x4, scoped, tag = 'scoped memory for tpu_custom_call.1']
    #allocation7 [shape = 'u8[12288]{0}', space=vmem, size = 0x3000, scoped, tag = 'input window, operand 3, single buffered']
    #allocation8 [shape = 'u8[4096]{0}', space=vmem, size = 0x1000, scoped, tag = 'output window, operand 0, single buffered']
    #allocation9 [shape = 'u8[4096]{0}', space=vmem, size = 0x1000, scoped, tag = 'output window, operand 1, single buffered']
    #allocation10 [shape = 's32[1]{0}', space=sflag, size = 0x4, scoped, tag = 'scoped memory for tpu_custom_call.1']
    %12 = vsyncpa [#allocation3], 0
    %13 = vsyncpa [#allocation6], 0
    %14 = vsyncpa [#allocation4], 0
    %15 = vsyncpa [#allocation10], 0
    // Predicated region
    $region2: #{tpu_custom_call.1} parent=1 // pred_check
      _
    $region3: #{tpu_custom_call.1} parent=1 // pred_check_branch
      %17 = sbr.rel (0) target = $region5
    $region4: #{tpu_custom_call.1} parent=1 // pred_region
      %s19 = ssub.s32 128, 32
      %20 = vsyncadd [#allocation3], %s19
      %s21 = sshll.u32 [#allocation2], 4
      %s22 = int_to_ptr.vmem [resolvable:$true] %s21
      %27 = dma.hbm_to_vmem [thread:$0]  %s0, 32, %s22, [#allocation3], 32, 32, 2
    $region5: #{tpu_custom_call.1} parent=1 // pred_fallthru
      _
    // Predicated region
    $region6: #{tpu_custom_call.1} parent=1 // pred_check
      _
    $region7: #{tpu_custom_call.1} parent=1 // pred_check_branch
      %29 = sbr.rel (0) target = $region9
    $region8: #{tpu_custom_call.1} parent=1 // pred_region
      _
    $region9: #{tpu_custom_call.1} parent=1 // pred_fallthru
      _
    // Predicated region
    $region10: #{tpu_custom_call.1} parent=1 // pred_check
      _
    $region11: #{tpu_custom_call.1} parent=1 // pred_check_branch
      %31 = sbr.rel (0) target = $region13
    $region12: #{tpu_custom_call.1} parent=1 // pred_region
      %s33 = ssub.s32 256, 256
      %34 = vsyncadd [#allocation6], %s33
      %s35 = sshll.u32 [#allocation5], 4
      %s36 = int_to_ptr.vmem [resolvable:$true] %s35
      %41 = dma.hbm_to_vmem [thread:$0]  %s2, 256, %s36, [#allocation6], 128, 128, 8
    $region13: #{tpu_custom_call.1} parent=1 // pred_fallthru
      _
    // Predicated region
    $region14: #{tpu_custom_call.1} parent=1 // pred_check
      _
    $region15: #{tpu_custom_call.1} parent=1 // pred_check_branch
      %43 = sbr.rel (0) target = $region17
    $region16: #{tpu_custom_call.1} parent=1 // pred_region
      %s45 = ssub.s32 384, 384
      %46 = vsyncadd [#allocation6], %s45
      %s47 = sshll.u32 [#allocation7], 4
      %s48 = int_to_ptr.vmem [resolvable:$true] %s47
      %53 = dma.hbm_to_vmem [thread:$0]  %s3, 384, %s48, [#allocation6], 128, 128, 8
    $region17: #{tpu_custom_call.1} parent=1 // pred_fallthru
      _
    // Predicated region
    $region18: #{tpu_custom_call.1} parent=1 // pred_check
      _
    $region19: #{tpu_custom_call.1} parent=1 // pred_check_branch
      %55 = sbr.rel (0) target = $region21
    $region20: #{tpu_custom_call.1} parent=1 // pred_region
      _
    $region21: #{tpu_custom_call.1} parent=1 // pred_fallthru
      _
    // Predicated region
    $region22: #{tpu_custom_call.1} parent=1 // pred_check
      _
    $region23: #{tpu_custom_call.1} parent=1 // pred_check_branch
      %57 = sbr.rel (0) target = $region25
    $region24: #{tpu_custom_call.1} parent=1 // pred_region
      %58 = dma.done [#allocation3], 128
    $region25: #{tpu_custom_call.1} parent=1 // pred_fallthru
      _
    // Predicated region
    $region26: #{tpu_custom_call.1} parent=1 // pred_check
      _
    $region27: #{tpu_custom_call.1} parent=1 // pred_check_branch
      %60 = sbr.rel (0) target = $region29
    $region28: #{tpu_custom_call.1} parent=1 // pred_region
      %61 = dma.done [#allocation6], 256
    $region29: #{tpu_custom_call.1} parent=1 // pred_fallthru
      _
    // Predicated region
    $region30: #{tpu_custom_call.1} parent=1 // pred_check
      _
    $region31: #{tpu_custom_call.1} parent=1 // pred_check_branch
      %63 = sbr.rel (0) target = $region33
    $region32: #{tpu_custom_call.1} parent=1 // pred_region
      %64 = dma.done [#allocation6], 384
    $region33: #{tpu_custom_call.1} parent=1 // pred_fallthru
      _
    %v65 = vld [vmem:[%s4] sm:$0xf]
    %v66 = vld [vmem:[#allocation2] sm:$0xff]
    %v67 = vld [vmem:[#allocation5] sm:$0xff]
    %v68 = vld [vmem:[#allocation5 + $0x8] sm:$0xff]
    %v69 = vlaneseq
    %v70 = vshrl.u32 %v69, 7
    %v71 = vsub.s32 0, %v70
    %v72 = vrot.slane %v65, %v71
    %vm73 = vcmask 130048
    %v75 = vsel %vm73, %v66, 0
    %77 = vmatprep.subr.mxu0 0.0
    %78 = vmatpush1.msra.mxu0 %v67
    %79 = vmatprep.subr.mxu0 0.0
    %80 = vmatpush1.msra.mxu0 %v68
    %81 = vmatprep.subr.mxu0 0.0
    %82 = vmatpush1.msra.mxu0 0.0
    %83 = vmatprep.subr.mxu0 0.0
    %84 = vmatpush1.msra.mxu0 0.0
    %85 = vmatprep.subr.mxu0 0.0
    %86 = vmatpush1.msra.mxu0 0.0
    %87 = vmatprep.subr.mxu0 0.0
    %88 = vmatpush1.msra.mxu0 0.0
    %89 = vmatprep.subr.mxu0 0.0
    %90 = vmatpush1.msra.mxu0 0.0
    %91 = vmatprep.subr.mxu0 0.0
    %92 = vmatpush1.msra.mxu0 0.0
    %93 = vmatprep.subr.mxu0 0.0
    %94 = vmatpush1.msra.mxu0 0.0
    %95 = vmatprep.subr.mxu0 0.0
    %96 = vmatpush1.msra.mxu0 0.0
    %97 = vmatprep.subr.mxu0 0.0
    %98 = vmatpush1.msra.mxu0 0.0
    %99 = vmatprep.subr.mxu0 0.0
    %100 = vmatpush1.msra.mxu0 0.0
    %101 = vmatprep.subr.mxu0 0.0
    %102 = vmatpush1.msra.mxu0 0.0
    %103 = vmatprep.subr.mxu0 0.0
    %104 = vmatpush1.msra.mxu0 0.0
    %105 = vmatprep.subr.mxu0 0.0
    %106 = vmatpush1.msra.mxu0 0.0
    %107 = vmatprep.subr.mxu0 0.0
    %108 = vmatpush1.msra.mxu0 0.0
    %109 = vmatprep.subr.mxu0 0.0
    %110 = vmatpush1.msra.mxu0 0.0
    %111 = vmatprep.subr.mxu0 0.0
    %112 = vmatpush1.msra.mxu0 0.0
    %113 = vmatprep.subr.mxu0 0.0
    %114 = vmatpush1.msra.mxu0 0.0
    %115 = vmatprep.subr.mxu0 0.0
    %116 = vmatpush1.msra.mxu0 0.0
    %117 = vmatprep.subr.mxu0 0.0
    %118 = vmatpush1.msra.mxu0 0.0
    %119 = vmatprep.subr.mxu0 0.0
    %120 = vmatpush1.msra.mxu0 0.0
    %121 = vmatprep.subr.mxu0 0.0
    %122 = vmatpush1.msra.mxu0 0.0
    %123 = vmatprep.subr.mxu0 0.0
    %124 = vmatpush1.msra.mxu0 0.0
    %125 = vmatprep.subr.mxu0 0.0
    %126 = vmatpush1.msra.mxu0 0.0
    %127 = vmatprep.subr.mxu0 0.0
    %128 = vmatpush1.msra.mxu0 0.0
    %129 = vmatprep.subr.mxu0 0.0
    %130 = vmatpush1.msra.mxu0 0.0
    %131 = vmatprep.subr.mxu0 0.0
    %132 = vmatpush1.msra.mxu0 0.0
    %133 = vmatprep.subr.mxu0 0.0
    %134 = vmatpush1.msra.mxu0 0.0
    %135 = vmatprep.subr.mxu0 0.0
    %136 = vmatpush1.msra.mxu0 0.0
    %137 = vmatprep.subr.mxu0 0.0
    %138 = vmatpush1.msra.mxu0 0.0
    %139 = vmatprep.subr.mxu0 0.0
    %140 = vmatpush1.msra.mxu0 0.0
    %141 = vmatprep.mubr.f32.mxu0 0.0
    %142 = vmatmul.mubr.f32.gmra.mrb[0].mxu0 %v75
    %v143 = vpop.f32.mrb[0].mxu0
    %v144 = vadd.f32 %v72, %v143
    %v145 = vpop.f32.mrb[0].mxu0
    %146 = vdwg.mxu0
    %vm147 = vcmask 261120
    %v148 = vsel %vm147, %v144, 0.0
    %149 = vadd.xlane.f32.xlu0 %v148
    %v150 = vpop.xlane.xlu0 %149
    %v151 = vrcp.pop 32.0
    %v152 = vmul.f32 %v150, %v151
    %v153 = vsub.f32 %v144, %v152
    %v154 = vmul.f32 %v153, %v153
    %v155 = vsel %vm147, %v154, 0.0
    %156 = vadd.xlane.f32.xlu0 %v155
    %v157 = vpop.xlane.xlu0 %156
    %v158 = vmul.f32 %v157, %v151
    %v159 = vadd.f32 %v158, 1e-05
    %v160 = vrsqrt.pop %v159
    %v161 = vmul.f32 %v153, %v160
    %v162 = vlaneseq
    %v163 = vshrl.u32 %v162, 7
    %v164 = vsub.s32 2, %v163
    %v165 = vrot.slane %v65, %v164
    %v166 = vmul.f32 %v161, %v165
    %v167 = vlaneseq
    %v168 = vshrl.u32 %v167, 7
    %v169 = vsub.s32 3, %v168
    %v170 = vrot.slane %v65, %v169
    %v171 = vadd.f32 %v166, %v170
    %172 = vst.msk [vmem:[#allocation8] sm:$0xff] %vm147, %v171
    %v173 = vld [vmem:[%s1] sm:$0xff]
    %v174 = vld [vmem:[#allocation7] sm:$0xff]
    %v175 = vld [vmem:[#allocation7 + $0x8] sm:$0xff]
    %v176 = vld [vmem:[#allocation7 + $0x10] sm:$0xff]
    %v177 = vlaneseq
    %v178 = vshrl.u32 %v177, 7
    %v179 = vsub.s32 1, %v178
    %v180 = vrot.slane %v65, %v179
    %vm181 = vcmask 195584
    %v183 = vsel %vm181, %v173, 0
    %185 = vmatprep.subr.mxu0 0.0
    %186 = vmatpush1.msra.mxu0 %v174
    %187 = vmatprep.subr.mxu0 0.0
    %188 = vmatpush1.msra.mxu0 %v175
    %189 = vmatprep.subr.mxu0 0.0
    %190 = vmatpush1.msra.mxu0 %v176
    %191 = vmatprep.subr.mxu0 0.0
    %192 = vmatpush1.msra.mxu0 0.0
    %193 = vmatprep.subr.mxu0 0.0
    %194 = vmatpush1.msra.mxu0 0.0
    %195 = vmatprep.subr.mxu0 0.0
    %196 = vmatpush1.msra.mxu0 0.0
    %197 = vmatprep.subr.mxu0 0.0
    %198 = vmatpush1.msra.mxu0 0.0
    %199 = vmatprep.subr.mxu0 0.0
    %200 = vmatpush1.msra.mxu0 0.0
    %201 = vmatprep.subr.mxu0 0.0
    %202 = vmatpush1.msra.mxu0 0.0
    %203 = vmatprep.subr.mxu0 0.0
    %204 = vmatpush1.msra.mxu0 0.0
    %205 = vmatprep.subr.mxu0 0.0
    %206 = vmatpush1.msra.mxu0 0.0
    %207 = vmatprep.subr.mxu0 0.0
    %208 = vmatpush1.msra.mxu0 0.0
    %209 = vmatprep.subr.mxu0 0.0
    %210 = vmatpush1.msra.mxu0 0.0
    %211 = vmatprep.subr.mxu0 0.0
    %212 = vmatpush1.msra.mxu0 0.0
    %213 = vmatprep.subr.mxu0 0.0
    %214 = vmatpush1.msra.mxu0 0.0
    %215 = vmatprep.subr.mxu0 0.0
    %216 = vmatpush1.msra.mxu0 0.0
    %217 = vmatprep.subr.mxu0 0.0
    %218 = vmatpush1.msra.mxu0 0.0
    %219 = vmatprep.subr.mxu0 0.0
    %220 = vmatpush1.msra.mxu0 0.0
    %221 = vmatprep.subr.mxu0 0.0
    %222 = vmatpush1.msra.mxu0 0.0
    %223 = vmatprep.subr.mxu0 0.0
    %224 = vmatpush1.msra.mxu0 0.0
    %225 = vmatprep.subr.mxu0 0.0
    %226 = vmatpush1.msra.mxu0 0.0
    %227 = vmatprep.subr.mxu0 0.0
    %228 = vmatpush1.msra.mxu0 0.0
    %229 = vmatprep.subr.mxu0 0.0
    %230 = vmatpush1.msra.mxu0 0.0
    %231 = vmatprep.subr.mxu0 0.0
    %232 = vmatpush1.msra.mxu0 0.0
    %233 = vmatprep.subr.mxu0 0.0
    %234 = vmatpush1.msra.mxu0 0.0
    %235 = vmatprep.subr.mxu0 0.0
    %236 = vmatpush1.msra.mxu0 0.0
    %237 = vmatprep.subr.mxu0 0.0
    %238 = vmatpush1.msra.mxu0 0.0
    %239 = vmatprep.subr.mxu0 0.0
    %240 = vmatpush1.msra.mxu0 0.0
    %241 = vmatprep.subr.mxu0 0.0
    %242 = vmatpush1.msra.mxu0 0.0
    %243 = vmatprep.subr.mxu0 0.0
    %244 = vmatpush1.msra.mxu0 0.0
    %245 = vmatprep.subr.mxu0 0.0
    %246 = vmatpush1.msra.mxu0 0.0
    %247 = vmatprep.subr.mxu0 0.0
    %248 = vmatpush1.msra.mxu0 0.0
    %249 = vmatprep.mubr.f32.mxu0 0.0
    %250 = vmatmul.mubr.f32.gmra.mrb[0].mxu0 %v183
    %v251 = vpop.f32.mrb[0].mxu0
    %v252 = vadd.f32 %v180, %v251
    %v253 = vpop.f32.mrb[0].mxu0
    %254 = vdwg.mxu0
    %v255 = vsel %vm147, %v252, 0.0
    %256 = vadd.xlane.f32.xlu0 %v255
    %v257 = vpop.xlane.xlu0 %256
    %v258 = vmul.f32 %v257, %v151
    %v259 = vsub.f32 %v252, %v258
    %v260 = vmul.f32 %v259, %v259
    %v261 = vsel %vm147, %v260, 0.0
    %262 = vadd.xlane.f32.xlu0 %v261
    %v263 = vpop.xlane.xlu0 %262
    %v264 = vmul.f32 %v263, %v151
    %v265 = vadd.f32 %v264, 1e-05
    %v266 = vrsqrt.pop %v265
    %v267 = vmul.f32 %v259, %v266
    %v268 = vmul.f32 %v267, %v165
    %v269 = vadd.f32 %v268, %v170
    %270 = vst.msk [vmem:[#allocation9] sm:$0xff] %vm147, %v269
    // Predicated region
    $region34: #{tpu_custom_call.1} parent=1 // pred_check
      _
    $region35: #{tpu_custom_call.1} parent=1 // pred_check_branch
      %272 = sbr.rel (0) target = $region37
    $region36: #{tpu_custom_call.1} parent=1 // pred_region
      %s274 = ssub.s32 128, 32
      %275 = vsyncadd [#allocation4], %s274
      %s276 = sshll.u32 [#allocation8], 4
      %s277 = int_to_ptr.vmem [resolvable:$true] %s276
      %282 = dma.vmem_to_hbm [thread:$0]  %s277, 32, %s5, [#allocation4], 32, 32, 2
    $region37: #{tpu_custom_call.1} parent=1 // pred_fallthru
      _
    // Predicated region
    $region38: #{tpu_custom_call.1} parent=1 // pred_check
      _
    $region39: #{tpu_custom_call.1} parent=1 // pred_check_branch
      %284 = sbr.rel (0) target = $region41
    $region40: #{tpu_custom_call.1} parent=1 // pred_region
      %s286 = ssub.s32 128, 32
      %287 = vsyncadd [#allocation10], %s286
      %s288 = sshll.u32 [#allocation9], 4
      %s289 = int_to_ptr.vmem [resolvable:$true] %s288
      %294 = dma.vmem_to_hbm [thread:$0]  %s289, 32, %s6, [#allocation10], 32, 32, 2
    $region41: #{tpu_custom_call.1} parent=1 // pred_fallthru
      _
    // Predicated region
    $region42: #{tpu_custom_call.1} parent=1 // pred_check
      _
    $region43: #{tpu_custom_call.1} parent=1 // pred_check_branch
      %296 = sbr.rel (0) target = $region45
    $region44: #{tpu_custom_call.1} parent=1 // pred_region
      %297 = dma.done [#allocation4], 128
    $region45: #{tpu_custom_call.1} parent=1 // pred_fallthru
      _
    // Predicated region
    $region46: #{tpu_custom_call.1} parent=1 // pred_check
      _
    $region47: #{tpu_custom_call.1} parent=1 // pred_check_branch
      %299 = sbr.rel (0) target = $region49
    $region48: #{tpu_custom_call.1} parent=1 // pred_region
      %300 = dma.done [#allocation10], 128
    $region49: #{tpu_custom_call.1} parent=1 // pred_fallthru
      _
    %301 = vsyncpa [#allocation3], 1
    %302 = vsyncpa [#allocation6], 1
    %303 = vsyncpa [#allocation4], 1
    %304 = vsyncpa [#allocation10], 1

</llo_original>
